<compile_context>
chip_gen: v5e
topology: v5e:2x2
jax: 0.10.0
libtpu: 0.0.40
codegen_flags: <defaults>
</compile_context>

<pallas_src>
import functools

import jax
import jax.numpy as jnp
from jax.experimental import pallas as pl
from jax.experimental.pallas import tpu as pltpu

BETA = 10.0
SOFTPLUS_THRESHOLD = 20.0  # PyTorch nn.Softplus default threshold

DIMS = [784, 170, 130, 100, 70, 47]
LANE = 128
SUBLANE = 8


def _round_up(x, m):
    return ((x + m - 1) // m) * m


# Padded (lane-dense) feature widths: [784, 256, 256, 128, 128, 128]
PADDED = [DIMS[0]] + [_round_up(d, LANE) for d in DIMS[1:]]
# Lane offsets of y1..y5 inside the single output slab, and slab width (896).
SLAB_OFFSETS = [sum(PADDED[1:1 + i]) for i in range(5)]   # [0, 256, 512, 640, 768]
SLAB_WIDTH = sum(PADDED[1:])                               # 896


def _softplus_beta(z):
    """PyTorch Softplus(beta=BETA): (1/beta)*log(1+exp(beta*z)), linear above threshold."""
    bz = BETA * z
    safe = jnp.where(bz > SOFTPLUS_THRESHOLD, 0.0, bz)
    sp = jnp.log1p(jnp.exp(safe)) / BETA
    return jnp.where(bz > SOFTPLUS_THRESHOLD, z, sp)


def mlp_kernel(x_ref, w1_ref, w2_ref, w3_ref, w4_ref, w5_ref, slab_ref, *,
               matmul_dtype):
    """Fused forward pass for one batch tile: 5 matmuls + softplus, all in VMEM.

    Writes all (padded, lane-aligned) layer outputs into one output slab:
      y1 -> lanes [  0,256)   y2 -> [256,512)   y3 -> [512,640)
      y4 -> [640,768)         logits -> [768,896)
    """

    def mm(a, w_ref):
        # Weights are already stored in matmul_dtype (pre-cast once outside).
        return jnp.dot(a.astype(matmul_dtype), w_ref[...],
                       preferred_element_type=jnp.float32)

    o, p = SLAB_OFFSETS, PADDED
    y1 = _softplus_beta(mm(x_ref[...], w1_ref))
    slab_ref[:, o[0]:o[0] + p[1]] = y1
    y2 = _softplus_beta(mm(y1, w2_ref))
    slab_ref[:, o[1]:o[1] + p[2]] = y2
    y3 = _softplus_beta(mm(y2, w3_ref))
    slab_ref[:, o[2]:o[2] + p[3]] = y3
    y4 = _softplus_beta(mm(y3, w4_ref))
    slab_ref[:, o[3]:o[3] + p[4]] = y4
    slab_ref[:, o[4]:o[4] + p[5]] = mm(y4, w5_ref)


def prepare_weights(weights, matmul_dtype=jnp.float32):
    """One-time weight prep: PyTorch (out, in) layout -> padded (in_pad, out_pad).

    Padded rows/cols are zero, so padded activation lanes never contribute to
    the next layer.  Weights are cast ONCE to `matmul_dtype` (use bf16 for the
    production MXU path; keep f32 for strict validation).
    """
    assert len(weights) == 5
    prepared = []
    for li, w in enumerate(weights):
        out_d, in_d = w.shape
        assert in_d == DIMS[li] and out_d == DIMS[li + 1]
        wt = jnp.asarray(w, jnp.float32).T                       # (in, out)
        k_pad, n_pad = PADDED[li], PADDED[li + 1]
        wt_pad = jnp.zeros((k_pad, n_pad), jnp.float32).at[:in_d, :out_d].set(wt)
        prepared.append(wt_pad.astype(matmul_dtype))
    return prepared


def mymodel_forward(x, prepared_weights, *, block_m=1024, core_parallel=False,
                    single_buffer_weights=False, return_padded=False):
    """x: (B, 1, 784). prepared_weights: output of prepare_weights().

    Default returns ((y0, y1, y2, y3, y4), logits), mirroring MyModel.forward.
    With return_padded=True, returns (y0, slab) where slab is the lane-dense
    (B_pad, 896) f32 kernel output (valid lanes: SLAB_OFFSETS[i] + DIMS[i+1];
    rows >= B and padded lanes are garbage) — use this downstream to avoid the
    extra HBM slicing pass.
    """
    matmul_dtype = jnp.dtype(prepared_weights[0].dtype)
    y0 = jnp.squeeze(x, axis=1).astype(jnp.float32)              # (B, 784)
    B = y0.shape[0]

    # Balanced batch tile: minimize trailing padding, cap tile rows at block_m.
    n_tiles = pl.cdiv(B, block_m)
    tm = _round_up(pl.cdiv(B, n_tiles), SUBLANE)
    b_pad = n_tiles * tm
    grid = (n_tiles,)

    x_in = y0.astype(matmul_dtype)                               # halve DMA if bf16
    if b_pad != B:
        x_in = jnp.zeros((b_pad, DIMS[0]), matmul_dtype).at[:B].set(x_in)

    x_spec = pl.BlockSpec((tm, DIMS[0]), lambda i: (i, 0))
    # Full-block weight specs: constant index_map keeps weights VMEM-resident.
    if single_buffer_weights:
        # Reclaims the redundant second weight buffer (useful near the v7x
        # 64 MiB VMEM ceiling when tm is pushed to the maximum).
        w_specs = [pl.BlockSpec(w.shape, lambda i: (0, 0),
                                pipeline_mode=pl.Buffered(1))
                   for w in prepared_weights]
    else:
        w_specs = [pl.BlockSpec(w.shape, lambda i: (0, 0)) for w in prepared_weights]
    out_spec = pl.BlockSpec((tm, SLAB_WIDTH), lambda i: (i, 0))
    out_shape = jax.ShapeDtypeStruct((b_pad, SLAB_WIDTH), jnp.float32)

    w_elems = sum(PADDED[i] * PADDED[i + 1] for i in range(5))
    itemsize = matmul_dtype.itemsize
    cost = pl.CostEstimate(
        flops=2 * b_pad * w_elems,
        transcendentals=2 * b_pad * sum(PADDED[1:5]),            # exp + log1p, layers 1-4
        bytes_accessed=(b_pad * DIMS[0] * itemsize
                        + b_pad * SLAB_WIDTH * 4
                        + w_elems * itemsize),
    )

    batch_sem = pltpu.CORE_PARALLEL if core_parallel else "parallel"

    kernel = functools.partial(mlp_kernel, matmul_dtype=matmul_dtype)

    slab = pl.pallas_call(
        kernel,
        out_shape=out_shape,
        grid=grid,
        in_specs=[x_spec] + w_specs,
        out_specs=out_spec,
        compiler_params=pltpu.CompilerParams(
            dimension_semantics=(batch_sem,),
            vmem_limit_bytes=48 << 20,
        ),
        cost_estimate=cost,
    )(x_in, *prepared_weights)

    if return_padded:
        return (y0, slab)

    # Slice padded batch rows / feature lanes back to the module's true sizes.
    o = SLAB_OFFSETS
    y1 = slab[:B, o[0]:o[0] + DIMS[1]]
    y2 = slab[:B, o[1]:o[1] + DIMS[2]]
    y3 = slab[:B, o[2]:o[2] + DIMS[3]]
    y4 = slab[:B, o[3]:o[3] + DIMS[4]]
    logits = slab[:B, o[4]:o[4] + DIMS[5]]
    return (y0, y1, y2, y3, y4), logits


def _reference_forward(x, weights):
    """Plain-JAX reference (true, unpadded weights in PyTorch (out,in) layout)."""
    y0 = jnp.squeeze(x, axis=1)
    ys = [y0]
    h = y0
    for w in weights[:-1]:
        h = _softplus_beta(h @ w.T)
        ys.append(h)
    logits = h @ weights[-1].T
    return tuple(ys), logits


if __name__ == "__main__":
    key = jax.random.PRNGKey(0)

    # Deterministic weight init (Kaiming-uniform-ish, like nn.Linear default).
    weights = []
    for i in range(5):
        key, sub = jax.random.split(key)
        fan_in, fan_out = DIMS[i], DIMS[i + 1]
        bound = 1.0 / jnp.sqrt(fan_in)
        weights.append(
            jax.random.uniform(sub, (fan_out, fan_in), jnp.float32, -bound, bound))

    prepared_f32 = prepare_weights(weights)

    # Small-batch check (B=2, single grid step), strict f32 tolerance.
    key, sub = jax.random.split(key)
    B = 2
    x = jax.random.normal(sub, (B, 1, 784), jnp.float32)
    acts, logits = mymodel_forward(x, prepared_f32)
    jax.block_until_ready(logits)
    ref_acts, ref_logits = _reference_forward(x, weights)
    for a, r in zip(acts, ref_acts):
        assert a.shape == r.shape
        assert jnp.allclose(a, r, atol=1e-4, rtol=1e-4)
    assert jnp.allclose(logits, ref_logits, atol=1e-4, rtol=1e-4)
    assert logits.shape == (B, 47)

    # Ragged batch with a small block_m to exercise the balanced-tm multi-step
    # grid (B=300 -> 3 tiles of 104 rows, only 12 padded rows total).
    key, sub = jax.random.split(key)
    B2 = 300
    x2 = jax.random.normal(sub, (B2, 1, 784), jnp.float32)
    acts2, logits2 = mymodel_forward(x2, prepared_f32, block_m=128)
    jax.block_until_ready(logits2)
    ref_acts2, ref_logits2 = _reference_forward(x2, weights)
    for a, r in zip(acts2, ref_acts2):
        assert jnp.allclose(a, r, atol=1e-4, rtol=1e-4)
    assert jnp.allclose(logits2, ref_logits2, atol=1e-4, rtol=1e-4)
    assert logits2.shape == (B2, 47)

    # bf16 MXU-input path (production roofline on v5e/v7x): f32 accumulation,
    # loose sanity tolerance only (bf16 inputs cannot meet 1e-4 vs f32 ref).
    prepared_bf16 = prepare_weights(weights, matmul_dtype=jnp.bfloat16)
    acts3, logits3 = mymodel_forward(x2, prepared_bf16)
    jax.block_until_ready(logits3)
    assert logits3.shape == (B2, 47)
    assert bool(jnp.all(jnp.isfinite(logits3)))
    assert float(jnp.max(jnp.abs(logits3 - ref_logits2))) < 0.25

    print("KERNEL_OK")
</pallas_src>

<mosaic_0001>
module attributes {stable_mosaic.version = 11 : i64} {
  func.func @mlp_kernel(%arg0: i32, %arg1: memref<8x784xf32, #tpu.memory_space<vmem>>, %arg2: memref<784x256xf32, #tpu.memory_space<vmem>>, %arg3: memref<256x256xf32, #tpu.memory_space<vmem>>, %arg4: memref<256x128xf32, #tpu.memory_space<vmem>>, %arg5: memref<128x128xf32, #tpu.memory_space<vmem>>, %arg6: memref<128x128xf32, #tpu.memory_space<vmem>>, %arg7: memref<8x896xf32, #tpu.memory_space<vmem>>) attributes {dimension_semantics = [#tpu.dimension_semantics<parallel>], iteration_bounds = array<i64: 1>, scalar_prefetch = 0 : i64, scratch_operands = 0 : i64, tpu.core_type = #tpu.core_type<tc>, window_params = [{transform_indices = @transform_0, window_bounds = array<i64: 8, 784>}, {pipeline_mode = #tpu.pipeline_mode<synchronous>, transform_indices = @transform_1, window_bounds = array<i64: 784, 256>}, {pipeline_mode = #tpu.pipeline_mode<synchronous>, transform_indices = @transform_2, window_bounds = array<i64: 256, 256>}, {pipeline_mode = #tpu.pipeline_mode<synchronous>, transform_indices = @transform_3, window_bounds = array<i64: 256, 128>}, {pipeline_mode = #tpu.pipeline_mode<synchronous>, transform_indices = @transform_4, window_bounds = array<i64: 128, 128>}, {pipeline_mode = #tpu.pipeline_mode<synchronous>, transform_indices = @transform_5, window_bounds = array<i64: 128, 128>}, {transform_indices = @transform_6, window_bounds = array<i64: 8, 896>}]} {
    %c0 = arith.constant 0 : index
    %c0_0 = arith.constant 0 : index
    %0 = vector.load %arg1[%c0, %c0_0] : memref<8x784xf32, #tpu.memory_space<vmem>>, vector<8x784xf32>
    %c0_1 = arith.constant 0 : index
    %c0_2 = arith.constant 0 : index
    %1 = vector.load %arg2[%c0_1, %c0_2] : memref<784x256xf32, #tpu.memory_space<vmem>>, vector<784x256xf32>
    %cst = arith.constant dense<0.000000e+00> : vector<8x256xf32>
    %2 = tpu.matmul %0, %1, %cst {dimension_numbers = #tpu.dot_dimension_numbers<[1], [0], [0], [1], [0, 0, 1, 1], [], []>} : vector<8x784xf32>, vector<784x256xf32>, vector<8x256xf32> -> vector<8x256xf32>
    %cst_3 = arith.constant 1.000000e+01 : f32
    %3 = vector.broadcast %cst_3 : f32 to vector<8x256xf32>
    %4 = arith.mulf %3, %2 : vector<8x256xf32>
    %cst_4 = arith.constant 2.000000e+01 : f32
    %5 = vector.broadcast %cst_4 : f32 to vector<8x256xf32>
    %6 = arith.cmpf ogt, %4, %5 : vector<8x256xf32>
    %cst_5 = arith.constant 0.000000e+00 : f32
    %7 = vector.broadcast %cst_5 : f32 to vector<8x256xf32>
    %8 = arith.select %6, %7, %4 : vector<8x256xi1>, vector<8x256xf32>
    %9 = math.exp %8 : vector<8x256xf32>
    %10 = math.log1p %9 : vector<8x256xf32>
    %cst_6 = arith.constant 1.000000e+01 : f32
    %11 = vector.broadcast %cst_6 : f32 to vector<8x256xf32>
    %12 = arith.divf %10, %11 : vector<8x256xf32>
    %cst_7 = arith.constant 2.000000e+01 : f32
    %13 = vector.broadcast %cst_7 : f32 to vector<8x256xf32>
    %14 = arith.cmpf ogt, %4, %13 : vector<8x256xf32>
    %15 = arith.select %14, %2, %12 : vector<8x256xi1>, vector<8x256xf32>
    %c0_8 = arith.constant 0 : index
    %c0_9 = arith.constant 0 : index
    %16 = vector.load %arg7[%c0_8, %c0_9] : memref<8x896xf32, #tpu.memory_space<vmem>>, vector<8x256xf32>
    tpu.vector_store %arg7[%c0_8, %c0_9], %15 {strides = array<i32>} : memref<8x896xf32, #tpu.memory_space<vmem>>, vector<8x256xf32>,
    %c0_10 = arith.constant 0 : index
    %c0_11 = arith.constant 0 : index
    %17 = vector.load %arg3[%c0_10, %c0_11] : memref<256x256xf32, #tpu.memory_space<vmem>>, vector<256x256xf32>
    %cst_12 = arith.constant dense<0.000000e+00> : vector<8x256xf32>
    %18 = tpu.matmul %15, %17, %cst_12 {dimension_numbers = #tpu.dot_dimension_numbers<[1], [0], [0], [1], [0, 0, 1, 1], [], []>} : vector<8x256xf32>, vector<256x256xf32>, vector<8x256xf32> -> vector<8x256xf32>
    %cst_13 = arith.constant 1.000000e+01 : f32
    %19 = vector.broadcast %cst_13 : f32 to vector<8x256xf32>
    %20 = arith.mulf %19, %18 : vector<8x256xf32>
    %cst_14 = arith.constant 2.000000e+01 : f32
    %21 = vector.broadcast %cst_14 : f32 to vector<8x256xf32>
    %22 = arith.cmpf ogt, %20, %21 : vector<8x256xf32>
    %cst_15 = arith.constant 0.000000e+00 : f32
    %23 = vector.broadcast %cst_15 : f32 to vector<8x256xf32>
    %24 = arith.select %22, %23, %20 : vector<8x256xi1>, vector<8x256xf32>
    %25 = math.exp %24 : vector<8x256xf32>
    %26 = math.log1p %25 : vector<8x256xf32>
    %cst_16 = arith.constant 1.000000e+01 : f32
    %27 = vector.broadcast %cst_16 : f32 to vector<8x256xf32>
    %28 = arith.divf %26, %27 : vector<8x256xf32>
    %cst_17 = arith.constant 2.000000e+01 : f32
    %29 = vector.broadcast %cst_17 : f32 to vector<8x256xf32>
    %30 = arith.cmpf ogt, %20, %29 : vector<8x256xf32>
    %31 = arith.select %30, %18, %28 : vector<8x256xi1>, vector<8x256xf32>
    %c0_18 = arith.constant 0 : index
    %c256 = arith.constant 256 : index
    %32 = vector.load %arg7[%c0_18, %c256] : memref<8x896xf32, #tpu.memory_space<vmem>>, vector<8x256xf32>
    tpu.vector_store %arg7[%c0_18, %c256], %31 {strides = array<i32>} : memref<8x896xf32, #tpu.memory_space<vmem>>, vector<8x256xf32>,
    %c0_19 = arith.constant 0 : index
    %c0_20 = arith.constant 0 : index
    %33 = vector.load %arg4[%c0_19, %c0_20] : memref<256x128xf32, #tpu.memory_space<vmem>>, vector<256x128xf32>
    %cst_21 = arith.constant dense<0.000000e+00> : vector<8x128xf32>
    %34 = tpu.matmul %31, %33, %cst_21 {dimension_numbers = #tpu.dot_dimension_numbers<[1], [0], [0], [1], [0, 0, 1, 1], [], []>} : vector<8x256xf32>, vector<256x128xf32>, vector<8x128xf32> -> vector<8x128xf32>
    %cst_22 = arith.constant 1.000000e+01 : f32
    %35 = vector.broadcast %cst_22 : f32 to vector<8x128xf32>
    %36 = arith.mulf %35, %34 : vector<8x128xf32>
    %cst_23 = arith.constant 2.000000e+01 : f32
    %37 = vector.broadcast %cst_23 : f32 to vector<8x128xf32>
    %38 = arith.cmpf ogt, %36, %37 : vector<8x128xf32>
    %cst_24 = arith.constant 0.000000e+00 : f32
    %39 = vector.broadcast %cst_24 : f32 to vector<8x128xf32>
    %40 = arith.select %38, %39, %36 : vector<8x128xi1>, vector<8x128xf32>
    %41 = math.exp %40 : vector<8x128xf32>
    %42 = math.log1p %41 : vector<8x128xf32>
    %cst_25 = arith.constant 1.000000e+01 : f32
    %43 = vector.broadcast %cst_25 : f32 to vector<8x128xf32>
    %44 = arith.divf %42, %43 : vector<8x128xf32>
    %cst_26 = arith.constant 2.000000e+01 : f32
    %45 = vector.broadcast %cst_26 : f32 to vector<8x128xf32>
    %46 = arith.cmpf ogt, %36, %45 : vector<8x128xf32>
    %47 = arith.select %46, %34, %44 : vector<8x128xi1>, vector<8x128xf32>
    %c0_27 = arith.constant 0 : index
    %c512 = arith.constant 512 : index
    %48 = vector.load %arg7[%c0_27, %c512] : memref<8x896xf32, #tpu.memory_space<vmem>>, vector<8x128xf32>
    tpu.vector_store %arg7[%c0_27, %c512], %47 {strides = array<i32>} : memref<8x896xf32, #tpu.memory_space<vmem>>, vector<8x128xf32>,
    %c0_28 = arith.constant 0 : index
    %c0_29 = arith.constant 0 : index
    %49 = vector.load %arg5[%c0_28, %c0_29] : memref<128x128xf32, #tpu.memory_space<vmem>>, vector<128x128xf32>
    %cst_30 = arith.constant dense<0.000000e+00> : vector<8x128xf32>
    %50 = tpu.matmul %47, %49, %cst_30 {dimension_numbers = #tpu.dot_dimension_numbers<[1], [0], [0], [1], [0, 0, 1, 1], [], []>} : vector<8x128xf32>, vector<128x128xf32>, vector<8x128xf32> -> vector<8x128xf32>
    %cst_31 = arith.constant 1.000000e+01 : f32
    %51 = vector.broadcast %cst_31 : f32 to vector<8x128xf32>
    %52 = arith.mulf %51, %50 : vector<8x128xf32>
    %cst_32 = arith.constant 2.000000e+01 : f32
    %53 = vector.broadcast %cst_32 : f32 to vector<8x128xf32>
    %54 = arith.cmpf ogt, %52, %53 : vector<8x128xf32>
    %cst_33 = arith.constant 0.000000e+00 : f32
    %55 = vector.broadcast %cst_33 : f32 to vector<8x128xf32>
    %56 = arith.select %54, %55, %52 : vector<8x128xi1>, vector<8x128xf32>
    %57 = math.exp %56 : vector<8x128xf32>
    %58 = math.log1p %57 : vector<8x128xf32>
    %cst_34 = arith.constant 1.000000e+01 : f32
    %59 = vector.broadcast %cst_34 : f32 to vector<8x128xf32>
    %60 = arith.divf %58, %59 : vector<8x128xf32>
    %cst_35 = arith.constant 2.000000e+01 : f32
    %61 = vector.broadcast %cst_35 : f32 to vector<8x128xf32>
    %62 = arith.cmpf ogt, %52, %61 : vector<8x128xf32>
    %63 = arith.select %62, %50, %60 : vector<8x128xi1>, vector<8x128xf32>
    %c0_36 = arith.constant 0 : index
    %c640 = arith.constant 640 : index
    %64 = vector.load %arg7[%c0_36, %c640] : memref<8x896xf32, #tpu.memory_space<vmem>>, vector<8x128xf32>
    tpu.vector_store %arg7[%c0_36, %c640], %63 {strides = array<i32>} : memref<8x896xf32, #tpu.memory_space<vmem>>, vector<8x128xf32>,
    %c0_37 = arith.constant 0 : index
    %c0_38 = arith.constant 0 : index
    %65 = vector.load %arg6[%c0_37, %c0_38] : memref<128x128xf32, #tpu.memory_space<vmem>>, vector<128x128xf32>
    %cst_39 = arith.constant dense<0.000000e+00> : vector<8x128xf32>
    %66 = tpu.matmul %63, %65, %cst_39 {dimension_numbers = #tpu.dot_dimension_numbers<[1], [0], [0], [1], [0, 0, 1, 1], [], []>} : vector<8x128xf32>, vector<128x128xf32>, vector<8x128xf32> -> vector<8x128xf32>
    %c0_40 = arith.constant 0 : index
    %c768 = arith.constant 768 : index
    %67 = vector.load %arg7[%c0_40, %c768] : memref<8x896xf32, #tpu.memory_space<vmem>>, vector<8x128xf32>
    tpu.vector_store %arg7[%c0_40, %c768], %66 {strides = array<i32>} : memref<8x896xf32, #tpu.memory_space<vmem>>, vector<8x128xf32>,
    return
  }
  func.func @transform_0(%arg0: i32) -> (i32, i32) {
    %c0_i32 = arith.constant 0 : i32
    %c0_i32_0 = arith.constant 0 : i32
    return %arg0, %c0_i32 : i32, i32
  }
  func.func @transform_1(%arg0: i32) -> (i32, i32) {
    %c0_i32 = arith.constant 0 : i32
    %c0_i32_0 = arith.constant 0 : i32
    %c0_i32_1 = arith.constant 0 : i32
    return %c0_i32, %c0_i32_0 : i32, i32
  }
  func.func @transform_2(%arg0: i32) -> (i32, i32) {
    %c0_i32 = arith.constant 0 : i32
    %c0_i32_0 = arith.constant 0 : i32
    %c0_i32_1 = arith.constant 0 : i32
    return %c0_i32, %c0_i32_0 : i32, i32
  }
  func.func @transform_3(%arg0: i32) -> (i32, i32) {
    %c0_i32 = arith.constant 0 : i32
    %c0_i32_0 = arith.constant 0 : i32
    %c0_i32_1 = arith.constant 0 : i32
    return %c0_i32, %c0_i32_0 : i32, i32
  }
  func.func @transform_4(%arg0: i32) -> (i32, i32) {
    %c0_i32 = arith.constant 0 : i32
    %c0_i32_0 = arith.constant 0 : i32
    %c0_i32_1 = arith.constant 0 : i32
    return %c0_i32, %c0_i32_0 : i32, i32
  }
  func.func @transform_5(%arg0: i32) -> (i32, i32) {
    %c0_i32 = arith.constant 0 : i32
    %c0_i32_0 = arith.constant 0 : i32
    %c0_i32_1 = arith.constant 0 : i32
    return %c0_i32, %c0_i32_0 : i32, i32
  }
  func.func @transform_6(%arg0: i32) -> (i32, i32) {
    %c0_i32 = arith.constant 0 : i32
    %c0_i32_0 = arith.constant 0 : i32
    return %arg0, %c0_i32 : i32, i32
  }
}

</mosaic_0001>

<llo_original>
// kernel: tpu_custom_call.1
$region0: #{tpu_custom_call.1}
  #allocation0 [shape = 'u32[]', space=smem, size = 0x4, offset = 0x4, fixed_abs, tag = 'smem constant byte address 0x4 - core index']
  #allocation1 [shape = 'u32[72,128]{1,0:T(1,128)}', space=vmem, size = 0x9000, scoped, tag = 'internal scratch']
  %s0 = inlined_call_operand.hbm [shape: f32[8,784], index: 0, kind: input, shape index: {}]
  %s1 = inlined_call_operand.hbm [shape: f32[784,256], index: 1, kind: input, shape index: {}]
  %s2 = inlined_call_operand.hbm [shape: f32[256,256], index: 2, kind: input, shape index: {}]
  %s3 = inlined_call_operand.hbm [shape: f32[256,128], index: 3, kind: input, shape index: {}]
  %s4 = inlined_call_operand.hbm [shape: f32[128,128], index: 4, kind: input, shape index: {}]
  %s5 = inlined_call_operand.hbm [shape: f32[128,128], index: 5, kind: input, shape index: {}]
  %s6 = inlined_call_operand.hbm [shape: f32[8,896], index: 6, kind: output, shape index: {}]
  %s7 = sld [smem:[#allocation0]]
  $region58: #{tpu_custom_call.1} parent=0
    _
  %s9 = ssub.s32 1, %s7
  %s10 = scalar_select 0, %s9, %s7
  $region1: #{tpu_custom_call.1} parent=0
    #allocation2 [shape = 'u8[28672]{0}', space=vmem, size = 0x7000, scoped, tag = 'input window, operand 0, single buffered']
    #allocation3 [shape = 's32[1]{0}', space=sflag, size = 0x4, scoped, tag = 'scoped memory for tpu_custom_call.1']
    #allocation4 [shape = 's32[1]{0}', space=sflag, size = 0x4, scoped, tag = 'scoped memory for tpu_custom_call.1']
    #allocation5 [shape = 'u8[802816]{0}', space=vmem, size = 0xc4000, scoped, tag = 'input window, operand 1, single buffered']
    #allocation6 [shape = 's32[1]{0}', space=sflag, size = 0x4, scoped, tag = 'scoped memory for tpu_custom_call.1']
    #allocation7 [shape = 'u8[262144]{0}', space=vmem, size = 0x40000, scoped, tag = 'input window, operand 2, single buffered']
    #allocation8 [shape = 'u8[131072]{0}', space=vmem, size = 0x20000, scoped, tag = 'input window, operand 3, single buffered']
    #allocation9 [shape = 's32[1]{0}', space=sflag, size = 0x4, scoped, tag = 'scoped memory for tpu_custom_call.1']
    #allocation10 [shape = 'u8[65536]{0}', space=vmem, size = 0x10000, scoped, tag = 'input window, operand 4, single buffered']
    #allocation11 [shape = 'u8[65536]{0}', space=vmem, size = 0x10000, scoped, tag = 'input window, operand 5, single buffered']
    #allocation12 [shape = 's32[1]{0}', space=sflag, size = 0x4, scoped, tag = 'scoped memory for tpu_custom_call.1']
    #allocation13 [shape = 'u8[28672]{0}', space=vmem, size = 0x7000, scoped, tag = 'output window, operand 0, single buffered']
    %11 = vsyncpa [#allocation3], 0
    %12 = vsyncpa [#allocation6], 0
    %13 = vsyncpa [#allocation9], 0
    %14 = vsyncpa [#allocation12], 0
    %15 = vsyncpa [#allocation4], 0
    // Predicated region
    $region2: #{tpu_custom_call.1} parent=1 // pred_check
      _
    $region3: #{tpu_custom_call.1} parent=1 // pred_check_branch
      %17 = sbr.rel (0) target = $region5
    $region4: #{tpu_custom_call.1} parent=1 // pred_region
      %19 = vsyncadd [#allocation3], 0
      %s21 = sshll.u32 %s0, 4
      %s22 = int_to_ptr.hbm [resolvable:$true] %s21
      %s23 = sshll.u32 [#allocation2], 4
      %s24 = int_to_ptr.vmem [resolvable:$true] %s23
      %26 = dma.hbm_to_vmem [thread:$0]  %s22, 896, %s24, [#allocation3]
    $region5: #{tpu_custom_call.1} parent=1 // pred_fallthru
      _
    // Predicated region
    $region6: #{tpu_custom_call.1} parent=1 // pred_check
      _
    $region7: #{tpu_custom_call.1} parent=1 // pred_check_branch
      %28 = sbr.rel (0) target = $region9
    $region8: #{tpu_custom_call.1} parent=1 // pred_region
      %30 = vsyncadd [#allocation6], 0
      %s31 = sshll.u32 %s1, 4
      %s32 = int_to_ptr.hbm [resolvable:$true] %s31
      %s33 = sshll.u32 [#allocation5], 4
      %s34 = int_to_ptr.vmem [resolvable:$true] %s33
      %39 = dma.hbm_to_vmem [thread:$0]  %s32, 25088, %s34, [#allocation6], 256, 256, 16
    $region9: #{tpu_custom_call.1} parent=1 // pred_fallthru
      _
    // Predicated region
    $region10: #{tpu_custom_call.1} parent=1 // pred_check
      _
    $region11: #{tpu_custom_call.1} parent=1 // pred_check_branch
      %41 = sbr.rel (0) target = $region13
    $region12: #{tpu_custom_call.1} parent=1 // pred_region
      %43 = vsyncadd [#allocation6], 0
      %s44 = sshll.u32 %s2, 4
      %s45 = int_to_ptr.hbm [resolvable:$true] %s44
      %s46 = sshll.u32 [#allocation7], 4
      %s47 = int_to_ptr.vmem [resolvable:$true] %s46
      %52 = dma.hbm_to_vmem [thread:$0]  %s45, 8192, %s47, [#allocation6], 256, 256, 16
    $region13: #{tpu_custom_call.1} parent=1 // pred_fallthru
      _
    // Predicated region
    $region14: #{tpu_custom_call.1} parent=1 // pred_check
      _
    $region15: #{tpu_custom_call.1} parent=1 // pred_check_branch
      %54 = sbr.rel (0) target = $region17
    $region16: #{tpu_custom_call.1} parent=1 // pred_region
      %56 = vsyncadd [#allocation9], 0
      %s57 = sshll.u32 %s3, 4
      %s58 = int_to_ptr.hbm [resolvable:$true] %s57
      %s59 = sshll.u32 [#allocation8], 4
      %s60 = int_to_ptr.vmem [resolvable:$true] %s59
      %65 = dma.hbm_to_vmem [thread:$0]  %s58, 4096, %s60, [#allocation9], 128, 128, 8
    $region17: #{tpu_custom_call.1} parent=1 // pred_fallthru
      _
    // Predicated region
    $region18: #{tpu_custom_call.1} parent=1 // pred_check
      _
    $region19: #{tpu_custom_call.1} parent=1 // pred_check_branch
      %67 = sbr.rel (0) target = $region21
    $region20: #{tpu_custom_call.1} parent=1 // pred_region
      %69 = vsyncadd [#allocation9], 0
      %s70 = sshll.u32 %s4, 4
      %s71 = int_to_ptr.hbm [resolvable:$true] %s70
      %s72 = sshll.u32 [#allocation10], 4
      %s73 = int_to_ptr.vmem [resolvable:$true] %s72
      %78 = dma.hbm_to_vmem [thread:$0]  %s71, 2048, %s73, [#allocation9], 128, 128, 8
    $region21: #{tpu_custom_call.1} parent=1 // pred_fallthru
      _
    // Predicated region
    $region22: #{tpu_custom_call.1} parent=1 // pred_check
      _
    $region23: #{tpu_custom_call.1} parent=1 // pred_check_branch
      %80 = sbr.rel (0) target = $region25
    $region24: #{tpu_custom_call.1} parent=1 // pred_region
      %82 = vsyncadd [#allocation12], 0
      %s83 = sshll.u32 %s5, 4
      %s84 = int_to_ptr.hbm [resolvable:$true] %s83
      %s85 = sshll.u32 [#allocation11], 4
      %s86 = int_to_ptr.vmem [resolvable:$true] %s85
      %91 = dma.hbm_to_vmem [thread:$0]  %s84, 2048, %s86, [#allocation12], 128, 128, 8
    $region25: #{tpu_custom_call.1} parent=1 // pred_fallthru
      _
    // Predicated region
    $region26: #{tpu_custom_call.1} parent=1 // pred_check
      _
    $region27: #{tpu_custom_call.1} parent=1 // pred_check_branch
      %93 = sbr.rel (0) target = $region29
    $region28: #{tpu_custom_call.1} parent=1 // pred_region
      %95 = dma.done [#allocation3], 896
    $region29: #{tpu_custom_call.1} parent=1 // pred_fallthru
      _
    // Predicated region
    $region30: #{tpu_custom_call.1} parent=1 // pred_check
      _
    $region31: #{tpu_custom_call.1} parent=1 // pred_check_branch
      %97 = sbr.rel (0) target = $region33
    $region32: #{tpu_custom_call.1} parent=1 // pred_region
      %99 = dma.done [#allocation6], 25088
    $region33: #{tpu_custom_call.1} parent=1 // pred_fallthru
      _
    // Predicated region
    $region34: #{tpu_custom_call.1} parent=1 // pred_check
      _
    $region35: #{tpu_custom_call.1} parent=1 // pred_check_branch
      %101 = sbr.rel (0) target = $region37
    $region36: #{tpu_custom_call.1} parent=1 // pred_region
      %103 = dma.done [#allocation6], 8192
    $region37: #{tpu_custom_call.1} parent=1 // pred_fallthru
      _
    // Predicated region
    $region38: #{tpu_custom_call.1} parent=1 // pred_check
      _
    $region39: #{tpu_custom_call.1} parent=1 // pred_check_branch
      %105 = sbr.rel (0) target = $region41
    $region40: #{tpu_custom_call.1} parent=1 // pred_region
      %107 = dma.done [#allocation9], 4096
    $region41: #{tpu_custom_call.1} parent=1 // pred_fallthru
      _
    // Predicated region
    $region42: #{tpu_custom_call.1} parent=1 // pred_check
      _
    $region43: #{tpu_custom_call.1} parent=1 // pred_check_branch
      %109 = sbr.rel (0) target = $region45
    $region44: #{tpu_custom_call.1} parent=1 // pred_region
      %111 = dma.done [#allocation9], 2048
    $region45: #{tpu_custom_call.1} parent=1 // pred_fallthru
      _
    // Predicated region
    $region46: #{tpu_custom_call.1} parent=1 // pred_check
      _
    $region47: #{tpu_custom_call.1} parent=1 // pred_check_branch
      %113 = sbr.rel (0) target = $region49
    $region48: #{tpu_custom_call.1} parent=1 // pred_region
      %115 = dma.done [#allocation12], 2048
    $region49: #{tpu_custom_call.1} parent=1 // pred_fallthru
      _
    %v116 = vld [vmem:[#allocation2] sm:$0xff]
    %v117 = vld [vmem:[#allocation2 + $0x8] sm:$0xff]
    %v118 = vld [vmem:[#allocation2 + $0x10] sm:$0xff]
    %v119 = vld [vmem:[#allocation2 + $0x18] sm:$0xff]
    %v120 = vld [vmem:[#allocation2 + $0x20] sm:$0xff]
    %v121 = vld [vmem:[#allocation2 + $0x28] sm:$0xff]
    %v122 = vld [vmem:[#allocation2 + $0x30] sm:$0xff]
    %v123 = vld [vmem:[#allocation5] sm:$0xff]
    %v124 = vld [vmem:[#allocation5 + $0x8] sm:$0xff]
    %v125 = vld [vmem:[#allocation5 + $0x10] sm:$0xff]
    %v126 = vld [vmem:[#allocation5 + $0x18] sm:$0xff]
    %v127 = vld [vmem:[#allocation5 + $0x20] sm:$0xff]
    %v128 = vld [vmem:[#allocation5 + $0x28] sm:$0xff]
    %v129 = vld [vmem:[#allocation5 + $0x30] sm:$0xff]
    %v130 = vld [vmem:[#allocation5 + $0x38] sm:$0xff]
    %v131 = vld [vmem:[#allocation5 + $0x40] sm:$0xff]
    %v132 = vld [vmem:[#allocation5 + $0x48] sm:$0xff]
    %v133 = vld [vmem:[#allocation5 + $0x50] sm:$0xff]
    %v134 = vld [vmem:[#allocation5 + $0x58] sm:$0xff]
    %v135 = vld [vmem:[#allocation5 + $0x60] sm:$0xff]
    %v136 = vld [vmem:[#allocation5 + $0x68] sm:$0xff]
    %v137 = vld [vmem:[#allocation5 + $0x70] sm:$0xff]
    %v138 = vld [vmem:[#allocation5 + $0x78] sm:$0xff]
    %v139 = vld [vmem:[#allocation5 + $0x80] sm:$0xff]
    %v140 = vld [vmem:[#allocation5 + $0x88] sm:$0xff]
    %v141 = vld [vmem:[#allocation5 + $0x90] sm:$0xff]
    %v142 = vld [vmem:[#allocation5 + $0x98] sm:$0xff]
    %v143 = vld [vmem:[#allocation5 + $0xa0] sm:$0xff]
    %v144 = vld [vmem:[#allocation5 + $0xa8] sm:$0xff]
    %v145 = vld [vmem:[#allocation5 + $0xb0] sm:$0xff]
    %v146 = vld [vmem:[#allocation5 + $0xb8] sm:$0xff]
    %v147 = vld [vmem:[#allocation5 + $0xc0] sm:$0xff]
    %v148 = vld [vmem:[#allocation5 + $0xc8] sm:$0xff]
    %v149 = vld [vmem:[#allocation5 + $0xd0] sm:$0xff]
    %v150 = vld [vmem:[#allocation5 + $0xd8] sm:$0xff]
    %v151 = vld [vmem:[#allocation5 + $0xe0] sm:$0xff]
    %v152 = vld [vmem:[#allocation5 + $0xe8] sm:$0xff]
    %v153 = vld [vmem:[#allocation5 + $0xf0] sm:$0xff]
    %v154 = vld [vmem:[#allocation5 + $0xf8] sm:$0xff]
    %v155 = vld [vmem:[#allocation5 + $0x100] sm:$0xff]
    %v156 = vld [vmem:[#allocation5 + $0x108] sm:$0xff]
    %v157 = vld [vmem:[#allocation5 + $0x110] sm:$0xff]
    %v158 = vld [vmem:[#allocation5 + $0x118] sm:$0xff]
    %v159 = vld [vmem:[#allocation5 + $0x120] sm:$0xff]
    %v160 = vld [vmem:[#allocation5 + $0x128] sm:$0xff]
    %v161 = vld [vmem:[#allocation5 + $0x130] sm:$0xff]
    %v162 = vld [vmem:[#allocation5 + $0x138] sm:$0xff]
    %v163 = vld [vmem:[#allocation5 + $0x140] sm:$0xff]
    %v164 = vld [vmem:[#allocation5 + $0x148] sm:$0xff]
    %v165 = vld [vmem:[#allocation5 + $0x150] sm:$0xff]
    %v166 = vld [vmem:[#allocation5 + $0x158] sm:$0xff]
    %v167 = vld [vmem:[#allocation5 + $0x160] sm:$0xff]
    %v168 = vld [vmem:[#allocation5 + $0x168] sm:$0xff]
    %v169 = vld [vmem:[#allocation5 + $0x170] sm:$0xff]
    %v170 = vld [vmem:[#allocation5 + $0x178] sm:$0xff]
    %v171 = vld [vmem:[#allocation5 + $0x180] sm:$0xff]
    %v172 = vld [vmem:[#allocation5 + $0x188] sm:$0xff]
    %v173 = vld [vmem:[#allocation5 + $0x190] sm:$0xff]
    %v174 = vld [vmem:[#allocation5 + $0x198] sm:$0xff]
    %v175 = vld [vmem:[#allocation5 + $0x1a0] sm:$0xff]
    %v176 = vld [vmem:[#allocation5 + $0x1a8] sm:$0xff]
    %v177 = vld [vmem:[#allocation5 + $0x1b0] sm:$0xff]
    %v178 = vld [vmem:[#allocation5 + $0x1b8] sm:$0xff]
    %v179 = vld [vmem:[#allocation5 + $0x1c0] sm:$0xff]
    %v180 = vld [vmem:[#allocation5 + $0x1c8] sm:$0xff]
    %v181 = vld [vmem:[#allocation5 + $0x1d0] sm:$0xff]
    %v182 = vld [vmem:[#allocation5 + $0x1d8] sm:$0xff]
    %v183 = vld [vmem:[#allocation5 + $0x1e0] sm:$0xff]
    %v184 = vld [vmem:[#allocation5 + $0x1e8] sm:$0xff]
    %v185 = vld [vmem:[#allocation5 + $0x1f0] sm:$0xff]
    %v186 = vld [vmem:[#allocation5 + $0x1f8] sm:$0xff]
    %v187 = vld [vmem:[#allocation5 + $0x200] sm:$0xff]
    %v188 = vld [vmem:[#allocation5 + $0x208] sm:$0xff]
    %v189 = vld [vmem:[#allocation5 + $0x210] sm:$0xff]
    %v190 = vld [vmem:[#allocation5 + $0x218] sm:$0xff]
    %v191 = vld [vmem:[#allocation5 + $0x220] sm:$0xff]
    %v192 = vld [vmem:[#allocation5 + $0x228] sm:$0xff]
    %v193 = vld [vmem:[#allocation5 + $0x230] sm:$0xff]
    %v194 = vld [vmem:[#allocation5 + $0x238] sm:$0xff]
    %v195 = vld [vmem:[#allocation5 + $0x240] sm:$0xff]
    %v196 = vld [vmem:[#allocation5 + $0x248] sm:$0xff]
    %v197 = vld [vmem:[#allocation5 + $0x250] sm:$0xff]
    %v198 = vld [vmem:[#allocation5 + $0x258] sm:$0xff]
    %v199 = vld [vmem:[#allocation5 + $0x260] sm:$0xff]
    %v200 = vld [vmem:[#allocation5 + $0x268] sm:$0xff]
    %v201 = vld [vmem:[#allocation5 + $0x270] sm:$0xff]
    %v202 = vld [vmem:[#allocation5 + $0x278] sm:$0xff]
    %v203 = vld [vmem:[#allocation5 + $0x280] sm:$0xff]
    %v204 = vld [vmem:[#allocation5 + $0x288] sm:$0xff]
    %v205 = vld [vmem:[#allocation5 + $0x290] sm:$0xff]
    %v206 = vld [vmem:[#allocation5 + $0x298] sm:$0xff]
    %v207 = vld [vmem:[#allocation5 + $0x2a0] sm:$0xff]
    %v208 = vld [vmem:[#allocation5 + $0x2a8] sm:$0xff]
    %v209 = vld [vmem:[#allocation5 + $0x2b0] sm:$0xff]
    %v210 = vld [vmem:[#allocation5 + $0x2b8] sm:$0xff]
    %v211 = vld [vmem:[#allocation5 + $0x2c0] sm:$0xff]
    %v212 = vld [vmem:[#allocation5 + $0x2c8] sm:$0xff]
    %v213 = vld [vmem:[#allocation5 + $0x2d0] sm:$0xff]
    %v214 = vld [vmem:[#allocation5 + $0x2d8] sm:$0xff]
    %v215 = vld [vmem:[#allocation5 + $0x2e0] sm:$0xff]
    %v216 = vld [vmem:[#allocation5 + $0x2e8] sm:$0xff]
    %v217 = vld [vmem:[#allocation5 + $0x2f0] sm:$0xff]
    %v218 = vld [vmem:[#allocation5 + $0x2f8] sm:$0xff]
    %v219 = vld [vmem:[#allocation5 + $0x300] sm:$0xff]
    %v220 = vld [vmem:[#allocation5 + $0x308] sm:$0xff]
    %v221 = vld [vmem:[#allocation5 + $0x310] sm:$0xff]
    %v222 = vld [vmem:[#allocation5 + $0x318] sm:$0xff]
    %v223 = vld [vmem:[#allocation5 + $0x320] sm:$0xff]
    %v224 = vld [vmem:[#allocation5 + $0x328] sm:$0xff]
    %v225 = vld [vmem:[#allocation5 + $0x330] sm:$0xff]
    %v226 = vld [vmem:[#allocation5 + $0x338] sm:$0xff]
    %v227 = vld [vmem:[#allocation5 + $0x340] sm:$0xff]
    %v228 = vld [vmem:[#allocation5 + $0x348] sm:$0xff]
    %v229 = vld [vmem:[#allocation5 + $0x350] sm:$0xff]
    %v230 = vld [vmem:[#allocation5 + $0x358] sm:$0xff]
    %v231 = vld [vmem:[#allocation5 + $0x360] sm:$0xff]
    %v232 = vld [vmem:[#allocation5 + $0x368] sm:$0xff]
    %v233 = vld [vmem:[#allocation5 + $0x370] sm:$0xff]
    %v234 = vld [vmem:[#allocation5 + $0x378] sm:$0xff]
    %v235 = vld [vmem:[#allocation5 + $0x380] sm:$0xff]
    %v236 = vld [vmem:[#allocation5 + $0x388] sm:$0xff]
    %v237 = vld [vmem:[#allocation5 + $0x390] sm:$0xff]
    %v238 = vld [vmem:[#allocation5 + $0x398] sm:$0xff]
    %v239 = vld [vmem:[#allocation5 + $0x3a0] sm:$0xff]
    %v240 = vld [vmem:[#allocation5 + $0x3a8] sm:$0xff]
    %v241 = vld [vmem:[#allocation5 + $0x3b0] sm:$0xff]
    %v242 = vld [vmem:[#allocation5 + $0x3b8] sm:$0xff]
    %v243 = vld [vmem:[#allocation5 + $0x3c0] sm:$0xff]
    %v244 = vld [vmem:[#allocation5 + $0x3c8] sm:$0xff]
    %v245 = vld [vmem:[#allocation5 + $0x3d0] sm:$0xff]
    %v246 = vld [vmem:[#allocation5 + $0x3d8] sm:$0xff]
    %v247 = vld [vmem:[#allocation5 + $0x3e0] sm:$0xff]
    %v248 = vld [vmem:[#allocation5 + $0x3e8] sm:$0xff]
    %v249 = vld [vmem:[#allocation5 + $0x3f0] sm:$0xff]
    %v250 = vld [vmem:[#allocation5 + $0x3f8] sm:$0xff]
    %v251 = vld [vmem:[#allocation5 + $0x400] sm:$0xff]
    %v252 = vld [vmem:[#allocation5 + $0x408] sm:$0xff]
    %v253 = vld [vmem:[#allocation5 + $0x410] sm:$0xff]
    %v254 = vld [vmem:[#allocation5 + $0x418] sm:$0xff]
    %v255 = vld [vmem:[#allocation5 + $0x420] sm:$0xff]
    %v256 = vld [vmem:[#allocation5 + $0x428] sm:$0xff]
    %v257 = vld [vmem:[#allocation5 + $0x430] sm:$0xff]
    %v258 = vld [vmem:[#allocation5 + $0x438] sm:$0xff]
    %v259 = vld [vmem:[#allocation5 + $0x440] sm:$0xff]
    %v260 = vld [vmem:[#allocation5 + $0x448] sm:$0xff]
    %v261 = vld [vmem:[#allocation5 + $0x450] sm:$0xff]
    %v262 = vld [vmem:[#allocation5 + $0x458] sm:$0xff]
    %v263 = vld [vmem:[#allocation5 + $0x460] sm:$0xff]
    %v264 = vld [vmem:[#allocation5 + $0x468] sm:$0xff]
    %v265 = vld [vmem:[#allocation5 + $0x470] sm:$0xff]
    %v266 = vld [vmem:[#allocation5 + $0x478] sm:$0xff]
    %v267 = vld [vmem:[#allocation5 + $0x480] sm:$0xff]
    %v268 = vld [vmem:[#allocation5 + $0x488] sm:$0xff]
    %v269 = vld [vmem:[#allocation5 + $0x490] sm:$0xff]
    %v270 = vld [vmem:[#allocation5 + $0x498] sm:$0xff]
    %v271 = vld [vmem:[#allocation5 + $0x4a0] sm:$0xff]
    %v272 = vld [vmem:[#allocation5 + $0x4a8] sm:$0xff]
    %v273 = vld [vmem:[#allocation5 + $0x4b0] sm:$0xff]
    %v274 = vld [vmem:[#allocation5 + $0x4b8] sm:$0xff]
    %v275 = vld [vmem:[#allocation5 + $0x4c0] sm:$0xff]
    %v276 = vld [vmem:[#allocation5 + $0x4c8] sm:$0xff]
    %v277 = vld [vmem:[#allocation5 + $0x4d0] sm:$0xff]
    %v278 = vld [vmem:[#allocation5 + $0x4d8] sm:$0xff]
    %v279 = vld [vmem:[#allocation5 + $0x4e0] sm:$0xff]
    %v280 = vld [vmem:[#allocation5 + $0x4e8] sm:$0xff]
    %v281 = vld [vmem:[#allocation5 + $0x4f0] sm:$0xff]
    %v282 = vld [vmem:[#allocation5 + $0x4f8] sm:$0xff]
    %v283 = vld [vmem:[#allocation5 + $0x500] sm:$0xff]
    %v284 = vld [vmem:[#allocation5 + $0x508] sm:$0xff]
    %v285 = vld [vmem:[#allocation5 + $0x510] sm:$0xff]
    %v286 = vld [vmem:[#allocation5 + $0x518] sm:$0xff]
    %v287 = vld [vmem:[#allocation5 + $0x520] sm:$0xff]
    %v288 = vld [vmem:[#allocation5 + $0x528] sm:$0xff]
    %v289 = vld [vmem:[#allocation5 + $0x530] sm:$0xff]
    %v290 = vld [vmem:[#allocation5 + $0x538] sm:$0xff]
    %v291 = vld [vmem:[#allocation5 + $0x540] sm:$0xff]
    %v292 = vld [vmem:[#allocation5 + $0x548] sm:$0xff]
    %v293 = vld [vmem:[#allocation5 + $0x550] sm:$0xff]
    %v294 = vld [vmem:[#allocation5 + $0x558] sm:$0xff]
    %v295 = vld [vmem:[#allocation5 + $0x560] sm:$0xff]
    %v296 = vld [vmem:[#allocation5 + $0x568] sm:$0xff]
    %v297 = vld [vmem:[#allocation5 + $0x570] sm:$0xff]
    %v298 = vld [vmem:[#allocation5 + $0x578] sm:$0xff]
    %v299 = vld [vmem:[#allocation5 + $0x580] sm:$0xff]
    %v300 = vld [vmem:[#allocation5 + $0x588] sm:$0xff]
    %v301 = vld [vmem:[#allocation5 + $0x590] sm:$0xff]
    %v302 = vld [vmem:[#allocation5 + $0x598] sm:$0xff]
    %v303 = vld [vmem:[#allocation5 + $0x5a0] sm:$0xff]
    %v304 = vld [vmem:[#allocation5 + $0x5a8] sm:$0xff]
    %v305 = vld [vmem:[#allocation5 + $0x5b0] sm:$0xff]
    %v306 = vld [vmem:[#allocation5 + $0x5b8] sm:$0xff]
    %v307 = vld [vmem:[#allocation5 + $0x5c0] sm:$0xff]
    %v308 = vld [vmem:[#allocation5 + $0x5c8] sm:$0xff]
    %v309 = vld [vmem:[#allocation5 + $0x5d0] sm:$0xff]
    %v310 = vld [vmem:[#allocation5 + $0x5d8] sm:$0xff]
    %v311 = vld [vmem:[#allocation5 + $0x5e0] sm:$0xff]
    %v312 = vld [vmem:[#allocation5 + $0x5e8] sm:$0xff]
    %v313 = vld [vmem:[#allocation5 + $0x5f0] sm:$0xff]
    %v314 = vld [vmem:[#allocation5 + $0x5f8] sm:$0xff]
    %v315 = vld [vmem:[#allocation5 + $0x600] sm:$0xff]
    %v316 = vld [vmem:[#allocation5 + $0x608] sm:$0xff]
    %v317 = vld [vmem:[#allocation5 + $0x610] sm:$0xff]
    %v318 = vld [vmem:[#allocation5 + $0x618] sm:$0xff]
    %vm319 = vcmask 130048
    %v321 = vsel %vm319, %v122, 0
    %323 = vmatpush.msra.mxu0 %v153
    %324 = vmatpush.msra.mxu0 %v151
    %325 = vmatpush.msra.mxu0 %v149
    %326 = vmatpush.msra.mxu0 %v147
    %327 = vmatpush.msra.mxu0 %v145
    %328 = vmatpush.msra.mxu0 %v143
    %329 = vmatpush.msra.mxu0 %v141
    %330 = vmatpush.msra.mxu0 %v139
    %331 = vmatpush.msra.mxu0 %v137
    %332 = vmatpush.msra.mxu0 %v135
    %333 = vmatpush.msra.mxu0 %v133
    %334 = vmatpush.msra.mxu0 %v131
    %335 = vmatpush.msra.mxu0 %v129
    %336 = vmatpush.msra.mxu0 %v127
    %337 = vmatpush.msra.mxu0 %v125
    %338 = vmatpush.msra.mxu0 %v123
    %339 = vmatmul.f32.gmra.mxu0 %v116
    %v340 = vpop.f32.mrf.mxu0
    %v341 = vadd.f32 0.0, %v340
    %342 = vdwg.mxu0
    %343 = vmatpush.msra.mxu0 %v185
    %344 = vmatpush.msra.mxu0 %v183
    %345 = vmatpush.msra.mxu0 %v181
    %346 = vmatpush.msra.mxu0 %v179
    %347 = vmatpush.msra.mxu0 %v177
    %348 = vmatpush.msra.mxu0 %v175
    %349 = vmatpush.msra.mxu0 %v173
    %350 = vmatpush.msra.mxu0 %v171
    %351 = vmatpush.msra.mxu0 %v169
    %352 = vmatpush.msra.mxu0 %v167
    %353 = vmatpush.msra.mxu0 %v165
    %354 = vmatpush.msra.mxu0 %v163
    %355 = vmatpush.msra.mxu0 %v161
    %356 = vmatpush.msra.mxu0 %v159
    %357 = vmatpush.msra.mxu0 %v157
    %358 = vmatpush.msra.mxu0 %v155
    %359 = vmatmul.f32.gmra.mxu0 %v117
    %v360 = vpop.f32.mrf.mxu0
    %v361 = vadd.f32 %v341, %v360
    %362 = vdwg.mxu0
    %363 = vmatpush.msra.mxu0 %v217
    %364 = vmatpush.msra.mxu0 %v215
    %365 = vmatpush.msra.mxu0 %v213
    %366 = vmatpush.msra.mxu0 %v211
    %367 = vmatpush.msra.mxu0 %v209
    %368 = vmatpush.msra.mxu0 %v207
    %369 = vmatpush.msra.mxu0 %v205
    %370 = vmatpush.msra.mxu0 %v203
    %371 = vmatpush.msra.mxu0 %v201
    %372 = vmatpush.msra.mxu0 %v199
    %373 = vmatpush.msra.mxu0 %v197
    %374 = vmatpush.msra.mxu0 %v195
    %375 = vmatpush.msra.mxu0 %v193
    %376 = vmatpush.msra.mxu0 %v191
    %377 = vmatpush.msra.mxu0 %v189
    %378 = vmatpush.msra.mxu0 %v187
    %379 = vmatmul.f32.gmra.mxu0 %v118
    %v380 = vpop.f32.mrf.mxu0
    %v381 = vadd.f32 %v361, %v380
    %382 = vdwg.mxu0
    %383 = vmatpush.msra.mxu0 %v249
    %384 = vmatpush.msra.mxu0 %v247
    %385 = vmatpush.msra.mxu0 %v245
    %386 = vmatpush.msra.mxu0 %v243
    %387 = vmatpush.msra.mxu0 %v241
    %388 = vmatpush.msra.mxu0 %v239
    %389 = vmatpush.msra.mxu0 %v237
    %390 = vmatpush.msra.mxu0 %v235
    %391 = vmatpush.msra.mxu0 %v233
    %392 = vmatpush.msra.mxu0 %v231
    %393 = vmatpush.msra.mxu0 %v229
    %394 = vmatpush.msra.mxu0 %v227
    %395 = vmatpush.msra.mxu0 %v225
    %396 = vmatpush.msra.mxu0 %v223
    %397 = vmatpush.msra.mxu0 %v221
    %398 = vmatpush.msra.mxu0 %v219
    %399 = vmatmul.f32.gmra.mxu0 %v119
    %v400 = vpop.f32.mrf.mxu0
    %v401 = vadd.f32 %v381, %v400
    %402 = vdwg.mxu0
    %403 = vmatpush.msra.mxu0 %v281
    %404 = vmatpush.msra.mxu0 %v279
    %405 = vmatpush.msra.mxu0 %v277
    %406 = vmatpush.msra.mxu0 %v275
    %407 = vmatpush.msra.mxu0 %v273
    %408 = vmatpush.msra.mxu0 %v271
    %409 = vmatpush.msra.mxu0 %v269
    %410 = vmatpush.msra.mxu0 %v267
    %411 = vmatpush.msra.mxu0 %v265
    %412 = vmatpush.msra.mxu0 %v263
    %413 = vmatpush.msra.mxu0 %v261
    %414 = vmatpush.msra.mxu0 %v259
    %415 = vmatpush.msra.mxu0 %v257
    %416 = vmatpush.msra.mxu0 %v255
    %417 = vmatpush.msra.mxu0 %v253
    %418 = vmatpush.msra.mxu0 %v251
    %419 = vmatmul.f32.gmra.mxu0 %v120
    %v420 = vpop.f32.mrf.mxu0
    %v421 = vadd.f32 %v401, %v420
    %422 = vdwg.mxu0
    %423 = vmatpush.msra.mxu0 %v313
    %424 = vmatpush.msra.mxu0 %v311
    %425 = vmatpush.msra.mxu0 %v309
    %426 = vmatpush.msra.mxu0 %v307
    %427 = vmatpush.msra.mxu0 %v305
    %428 = vmatpush.msra.mxu0 %v303
    %429 = vmatpush.msra.mxu0 %v301
    %430 = vmatpush.msra.mxu0 %v299
    %431 = vmatpush.msra.mxu0 %v297
    %432 = vmatpush.msra.mxu0 %v295
    %433 = vmatpush.msra.mxu0 %v293
    %434 = vmatpush.msra.mxu0 %v291
    %435 = vmatpush.msra.mxu0 %v289
    %436 = vmatpush.msra.mxu0 %v287
    %437 = vmatpush.msra.mxu0 %v285
    %438 = vmatpush.msra.mxu0 %v283
    %439 = vmatmul.f32.gmra.mxu0 %v121
    %v440 = vpop.f32.mrf.mxu0
    %v441 = vadd.f32 %v421, %v440
    %442 = vdwg.mxu0
    %443 = vmatpush.msra.mxu0 0.0
    %444 = vmatpush.msra.mxu0 0.0
    %445 = vmatpush.msra.mxu0 0.0
    %446 = vmatpush.msra.mxu0 0.0
    %447 = vmatpush.msra.mxu0 0.0
    %448 = vmatpush.msra.mxu0 0.0
    %449 = vmatpush.msra.mxu0 0.0
    %450 = vmatpush.msra.mxu0 0.0
    %451 = vmatpush.msra.mxu0 0.0
    %452 = vmatpush.msra.mxu0 0.0
    %453 = vmatpush.msra.mxu0 0.0
    %454 = vmatpush.msra.mxu0 0.0
    %455 = vmatpush.msra.mxu0 0.0
    %456 = vmatpush.msra.mxu0 0.0
    %457 = vmatpush.msra.mxu0 %v317
    %458 = vmatpush.msra.mxu0 %v315
    %459 = vmatmul.f32.gmra.mxu0 %v321
    %v460 = vpop.f32.mrf.mxu0
    %v461 = vadd.f32 %v441, %v460
    %462 = vdwg.mxu0
    %463 = vmatpush.msra.mxu0 %v154
    %464 = vmatpush.msra.mxu0 %v152
    %465 = vmatpush.msra.mxu0 %v150
    %466 = vmatpush.msra.mxu0 %v148
    %467 = vmatpush.msra.mxu0 %v146
    %468 = vmatpush.msra.mxu0 %v144
    %469 = vmatpush.msra.mxu0 %v142
    %470 = vmatpush.msra.mxu0 %v140
    %471 = vmatpush.msra.mxu0 %v138
    %472 = vmatpush.msra.mxu0 %v136
    %473 = vmatpush.msra.mxu0 %v134
    %474 = vmatpush.msra.mxu0 %v132
    %475 = vmatpush.msra.mxu0 %v130
    %476 = vmatpush.msra.mxu0 %v128
    %477 = vmatpush.msra.mxu0 %v126
    %478 = vmatpush.msra.mxu0 %v124
    %479 = vmatmul.f32.gmra.mxu0 %v116
    %v480 = vpop.f32.mrf.mxu0
    %v481 = vadd.f32 0.0, %v480
    %482 = vdwg.mxu0
    %483 = vmatpush.msra.mxu0 %v186
    %484 = vmatpush.msra.mxu0 %v184
    %485 = vmatpush.msra.mxu0 %v182
    %486 = vmatpush.msra.mxu0 %v180
    %487 = vmatpush.msra.mxu0 %v178
    %488 = vmatpush.msra.mxu0 %v176
    %489 = vmatpush.msra.mxu0 %v174
    %490 = vmatpush.msra.mxu0 %v172
    %491 = vmatpush.msra.mxu0 %v170
    %492 = vmatpush.msra.mxu0 %v168
    %493 = vmatpush.msra.mxu0 %v166
    %494 = vmatpush.msra.mxu0 %v164
    %495 = vmatpush.msra.mxu0 %v162
    %496 = vmatpush.msra.mxu0 %v160
    %497 = vmatpush.msra.mxu0 %v158
    %498 = vmatpush.msra.mxu0 %v156
    %499 = vmatmul.f32.gmra.mxu0 %v117
    %v500 = vpop.f32.mrf.mxu0
    %v501 = vadd.f32 %v481, %v500
    %502 = vdwg.mxu0
    %503 = vmatpush.msra.mxu0 %v218
    %504 = vmatpush.msra.mxu0 %v216
    %505 = vmatpush.msra.mxu0 %v214
    %506 = vmatpush.msra.mxu0 %v212
    %507 = vmatpush.msra.mxu0 %v210
    %508 = vmatpush.msra.mxu0 %v208
    %509 = vmatpush.msra.mxu0 %v206
    %510 = vmatpush.msra.mxu0 %v204
    %511 = vmatpush.msra.mxu0 %v202
    %512 = vmatpush.msra.mxu0 %v200
    %513 = vmatpush.msra.mxu0 %v198
    %514 = vmatpush.msra.mxu0 %v196
    %515 = vmatpush.msra.mxu0 %v194
    %516 = vmatpush.msra.mxu0 %v192
    %517 = vmatpush.msra.mxu0 %v190
    %518 = vmatpush.msra.mxu0 %v188
    %519 = vmatmul.f32.gmra.mxu0 %v118
    %v520 = vpop.f32.mrf.mxu0
    %v521 = vadd.f32 %v501, %v520
    %522 = vdwg.mxu0
    %523 = vmatpush.msra.mxu0 %v250
    %524 = vmatpush.msra.mxu0 %v248
    %525 = vmatpush.msra.mxu0 %v246
    %526 = vmatpush.msra.mxu0 %v244
    %527 = vmatpush.msra.mxu0 %v242
    %528 = vmatpush.msra.mxu0 %v240
    %529 = vmatpush.msra.mxu0 %v238
    %530 = vmatpush.msra.mxu0 %v236
    %531 = vmatpush.msra.mxu0 %v234
    %532 = vmatpush.msra.mxu0 %v232
    %533 = vmatpush.msra.mxu0 %v230
    %534 = vmatpush.msra.mxu0 %v228
    %535 = vmatpush.msra.mxu0 %v226
    %536 = vmatpush.msra.mxu0 %v224
    %537 = vmatpush.msra.mxu0 %v222
    %538 = vmatpush.msra.mxu0 %v220
    %539 = vmatmul.f32.gmra.mxu0 %v119
    %v540 = vpop.f32.mrf.mxu0
    %v541 = vadd.f32 %v521, %v540
    %542 = vdwg.mxu0
    %543 = vmatpush.msra.mxu0 %v282
    %544 = vmatpush.msra.mxu0 %v280
    %545 = vmatpush.msra.mxu0 %v278
    %546 = vmatpush.msra.mxu0 %v276
    %547 = vmatpush.msra.mxu0 %v274
    %548 = vmatpush.msra.mxu0 %v272
    %549 = vmatpush.msra.mxu0 %v270
    %550 = vmatpush.msra.mxu0 %v268
    %551 = vmatpush.msra.mxu0 %v266
    %552 = vmatpush.msra.mxu0 %v264
    %553 = vmatpush.msra.mxu0 %v262
    %554 = vmatpush.msra.mxu0 %v260
    %555 = vmatpush.msra.mxu0 %v258
    %556 = vmatpush.msra.mxu0 %v256
    %557 = vmatpush.msra.mxu0 %v254
    %558 = vmatpush.msra.mxu0 %v252
    %559 = vmatmul.f32.gmra.mxu0 %v120
    %v560 = vpop.f32.mrf.mxu0
    %v561 = vadd.f32 %v541, %v560
    %562 = vdwg.mxu0
    %563 = vmatpush.msra.mxu0 %v314
    %564 = vmatpush.msra.mxu0 %v312
    %565 = vmatpush.msra.mxu0 %v310
    %566 = vmatpush.msra.mxu0 %v308
    %567 = vmatpush.msra.mxu0 %v306
    %568 = vmatpush.msra.mxu0 %v304
    %569 = vmatpush.msra.mxu0 %v302
    %570 = vmatpush.msra.mxu0 %v300
    %571 = vmatpush.msra.mxu0 %v298
    %572 = vmatpush.msra.mxu0 %v296
    %573 = vmatpush.msra.mxu0 %v294
    %574 = vmatpush.msra.mxu0 %v292
    %575 = vmatpush.msra.mxu0 %v290
    %576 = vmatpush.msra.mxu0 %v288
    %577 = vmatpush.msra.mxu0 %v286
    %578 = vmatpush.msra.mxu0 %v284
    %579 = vmatmul.f32.gmra.mxu0 %v121
    %v580 = vpop.f32.mrf.mxu0
    %v581 = vadd.f32 %v561, %v580
    %582 = vdwg.mxu0
    %583 = vmatpush.msra.mxu0 0.0
    %584 = vmatpush.msra.mxu0 0.0
    %585 = vmatpush.msra.mxu0 0.0
    %586 = vmatpush.msra.mxu0 0.0
    %587 = vmatpush.msra.mxu0 0.0
    %588 = vmatpush.msra.mxu0 0.0
    %589 = vmatpush.msra.mxu0 0.0
    %590 = vmatpush.msra.mxu0 0.0
    %591 = vmatpush.msra.mxu0 0.0
    %592 = vmatpush.msra.mxu0 0.0
    %593 = vmatpush.msra.mxu0 0.0
    %594 = vmatpush.msra.mxu0 0.0
    %595 = vmatpush.msra.mxu0 0.0
    %596 = vmatpush.msra.mxu0 0.0
    %597 = vmatpush.msra.mxu0 %v318
    %598 = vmatpush.msra.mxu0 %v316
    %599 = vmatmul.f32.gmra.mxu0 %v321
    %v600 = vpop.f32.mrf.mxu0
    %v601 = vadd.f32 %v581, %v600
    %602 = vdwg.mxu0
    %v603 = vmul.f32 %v461, 10.0
    %v604 = vmul.f32 %v601, 10.0
    %vm605 = vcmp.gt.f32.partialorder %v603, 20.0
    %vm606 = vcmp.gt.f32.partialorder %v604, 20.0
    %v607 = vsel %vm605, 0.0, %v603
    %v608 = vsel %vm606, 0.0, %v604
    %v609 = vmul.f32 %v607, 1.442695
    %v610 = vpow.pop %v609
    %v611 = vmul.f32 %v608, 1.442695
    %v612 = vpow.pop %v611
    %v613 = vadd.f32 %v610, 1.0
    %v614 = vlog2.pop %v613
    %v615 = vmul.f32 %v614, 0.6931472
    %v616 = vmul.f32 -0.5, %v610
    %v617 = vadd.f32 %v616, 1.0
    %v618 = vmul.f32 %v617, %v610
    %v619 = vand.u32 2147483647, %v610
    %vm620 = vcmp.lt.f32.partialorder %v619, 0.0004427343
    %v621 = vsel %vm620, %v618, %v615
    %v622 = vadd.f32 %v612, 1.0
    %v623 = vlog2.pop %v622
    %v624 = vmul.f32 %v623, 0.6931472
    %v625 = vmul.f32 -0.5, %v612
    %v626 = vadd.f32 %v625, 1.0
    %v627 = vmul.f32 %v626, %v612
    %v628 = vand.u32 2147483647, %v612
    %vm629 = vcmp.lt.f32.partialorder %v628, 0.0004427343
    %v630 = vsel %vm629, %v627, %v624
    %v631 = vrcp.pop 10.0
    %v632 = vmul.f32 10.0, %v631
    %v633 = vsub.f32 1.0, %v632
    %v634 = vmul.f32 %v631, %v633
    %v635 = vadd.f32 %v631, %v634
    %vm636 = vweird.f32 %v631
    %v637 = vsel %vm636, %v631, %v635
    %v638 = vmul.f32 %v621, %v637
    %v639 = vmul.f32 %v630, %v637
    %v640 = vsel %vm605, %v461, %v638
    %v641 = vsel %vm606, %v601, %v639
    %642 = vst [vmem:[#allocation13] sm:$0xff] %v640
    %643 = vst [vmem:[#allocation13 + $0x8] sm:$0xff] %v641
    %v644 = vld [vmem:[#allocation7] sm:$0xff]
    %v645 = vld [vmem:[#allocation7 + $0x8] sm:$0xff]
    %v646 = vld [vmem:[#allocation7 + $0x10] sm:$0xff]
    %v647 = vld [vmem:[#allocation7 + $0x18] sm:$0xff]
    %v648 = vld [vmem:[#allocation7 + $0x20] sm:$0xff]
    %v649 = vld [vmem:[#allocation7 + $0x28] sm:$0xff]
    %v650 = vld [vmem:[#allocation7 + $0x30] sm:$0xff]
    %v651 = vld [vmem:[#allocation7 + $0x38] sm:$0xff]
    %v652 = vld [vmem:[#allocation7 + $0x40] sm:$0xff]
    %v653 = vld [vmem:[#allocation7 + $0x48] sm:$0xff]
    %v654 = vld [vmem:[#allocation7 + $0x50] sm:$0xff]
    %v655 = vld [vmem:[#allocation7 + $0x58] sm:$0xff]
    %v656 = vld [vmem:[#allocation7 + $0x60] sm:$0xff]
    %v657 = vld [vmem:[#allocation7 + $0x68] sm:$0xff]
    %v658 = vld [vmem:[#allocation7 + $0x70] sm:$0xff]
    %v659 = vld [vmem:[#allocation7 + $0x78] sm:$0xff]
    %v660 = vld [vmem:[#allocation7 + $0x80] sm:$0xff]
    %v661 = vld [vmem:[#allocation7 + $0x88] sm:$0xff]
    %v662 = vld [vmem:[#allocation7 + $0x90] sm:$0xff]
    %v663 = vld [vmem:[#allocation7 + $0x98] sm:$0xff]
    %v664 = vld [vmem:[#allocation7 + $0xa0] sm:$0xff]
    %v665 = vld [vmem:[#allocation7 + $0xa8] sm:$0xff]
    %v666 = vld [vmem:[#allocation7 + $0xb0] sm:$0xff]
    %v667 = vld [vmem:[#allocation7 + $0xb8] sm:$0xff]
    %v668 = vld [vmem:[#allocation7 + $0xc0] sm:$0xff]
    %v669 = vld [vmem:[#allocation7 + $0xc8] sm:$0xff]
    %v670 = vld [vmem:[#allocation7 + $0xd0] sm:$0xff]
    %v671 = vld [vmem:[#allocation7 + $0xd8] sm:$0xff]
    %v672 = vld [vmem:[#allocation7 + $0xe0] sm:$0xff]
    %v673 = vld [vmem:[#allocation7 + $0xe8] sm:$0xff]
    %v674 = vld [vmem:[#allocation7 + $0xf0] sm:$0xff]
    %v675 = vld [vmem:[#allocation7 + $0xf8] sm:$0xff]
    %v676 = vld [vmem:[#allocation7 + $0x100] sm:$0xff]
    %v677 = vld [vmem:[#allocation7 + $0x108] sm:$0xff]
    %v678 = vld [vmem:[#allocation7 + $0x110] sm:$0xff]
    %v679 = vld [vmem:[#allocation7 + $0x118] sm:$0xff]
    %v680 = vld [vmem:[#allocation7 + $0x120] sm:$0xff]
    %v681 = vld [vmem:[#allocation7 + $0x128] sm:$0xff]
    %v682 = vld [vmem:[#allocation7 + $0x130] sm:$0xff]
    %v683 = vld [vmem:[#allocation7 + $0x138] sm:$0xff]
    %v684 = vld [vmem:[#allocation7 + $0x140] sm:$0xff]
    %v685 = vld [vmem:[#allocation7 + $0x148] sm:$0xff]
    %v686 = vld [vmem:[#allocation7 + $0x150] sm:$0xff]
    %v687 = vld [vmem:[#allocation7 + $0x158] sm:$0xff]
    %v688 = vld [vmem:[#allocation7 + $0x160] sm:$0xff]
    %v689 = vld [vmem:[#allocation7 + $0x168] sm:$0xff]
    %v690 = vld [vmem:[#allocation7 + $0x170] sm:$0xff]
    %v691 = vld [vmem:[#allocation7 + $0x178] sm:$0xff]
    %v692 = vld [vmem:[#allocation7 + $0x180] sm:$0xff]
    %v693 = vld [vmem:[#allocation7 + $0x188] sm:$0xff]
    %v694 = vld [vmem:[#allocation7 + $0x190] sm:$0xff]
    %v695 = vld [vmem:[#allocation7 + $0x198] sm:$0xff]
    %v696 = vld [vmem:[#allocation7 + $0x1a0] sm:$0xff]
    %v697 = vld [vmem:[#allocation7 + $0x1a8] sm:$0xff]
    %v698 = vld [vmem:[#allocation7 + $0x1b0] sm:$0xff]
    %v699 = vld [vmem:[#allocation7 + $0x1b8] sm:$0xff]
    %v700 = vld [vmem:[#allocation7 + $0x1c0] sm:$0xff]
    %v701 = vld [vmem:[#allocation7 + $0x1c8] sm:$0xff]
    %v702 = vld [vmem:[#allocation7 + $0x1d0] sm:$0xff]
    %v703 = vld [vmem:[#allocation7 + $0x1d8] sm:$0xff]
    %v704 = vld [vmem:[#allocation7 + $0x1e0] sm:$0xff]
    %v705 = vld [vmem:[#allocation7 + $0x1e8] sm:$0xff]
    %v706 = vld [vmem:[#allocation7 + $0x1f0] sm:$0xff]
    %v707 = vld [vmem:[#allocation7 + $0x1f8] sm:$0xff]
    %708 = vmatpush.msra.mxu0 %v674
    %709 = vmatpush.msra.mxu0 %v672
    %710 = vmatpush.msra.mxu0 %v670
    %711 = vmatpush.msra.mxu0 %v668
    %712 = vmatpush.msra.mxu0 %v666
    %713 = vmatpush.msra.mxu0 %v664
    %714 = vmatpush.msra.mxu0 %v662
    %715 = vmatpush.msra.mxu0 %v660
    %716 = vmatpush.msra.mxu0 %v658
    %717 = vmatpush.msra.mxu0 %v656
    %718 = vmatpush.msra.mxu0 %v654
    %719 = vmatpush.msra.mxu0 %v652
    %720 = vmatpush.msra.mxu0 %v650
    %721 = vmatpush.msra.mxu0 %v648
    %722 = vmatpush.msra.mxu0 %v646
    %723 = vmatpush.msra.mxu0 %v644
    %724 = vmatmul.f32.gmra.mxu0 %v640
    %v725 = vpop.f32.mrf.mxu0
    %v726 = vadd.f32 0.0, %v725
    %727 = vdwg.mxu0
    %728 = vmatpush.msra.mxu0 %v706
    %729 = vmatpush.msra.mxu0 %v704
    %730 = vmatpush.msra.mxu0 %v702
    %731 = vmatpush.msra.mxu0 %v700
    %732 = vmatpush.msra.mxu0 %v698
    %733 = vmatpush.msra.mxu0 %v696
    %734 = vmatpush.msra.mxu0 %v694
    %735 = vmatpush.msra.mxu0 %v692
    %736 = vmatpush.msra.mxu0 %v690
    %737 = vmatpush.msra.mxu0 %v688
    %738 = vmatpush.msra.mxu0 %v686
    %739 = vmatpush.msra.mxu0 %v684
    %740 = vmatpush.msra.mxu0 %v682
    %741 = vmatpush.msra.mxu0 %v680
    %742 = vmatpush.msra.mxu0 %v678
    %743 = vmatpush.msra.mxu0 %v676
    %744 = vmatmul.f32.gmra.mxu0 %v641
    %v745 = vpop.f32.mrf.mxu0
    %v746 = vadd.f32 %v726, %v745
    %747 = vdwg.mxu0
    %748 = vmatpush.msra.mxu0 %v675
    %749 = vmatpush.msra.mxu0 %v673
    %750 = vmatpush.msra.mxu0 %v671
    %751 = vmatpush.msra.mxu0 %v669
    %752 = vmatpush.msra.mxu0 %v667
    %753 = vmatpush.msra.mxu0 %v665
    %754 = vmatpush.msra.mxu0 %v663
    %755 = vmatpush.msra.mxu0 %v661
    %756 = vmatpush.msra.mxu0 %v659
    %757 = vmatpush.msra.mxu0 %v657
    %758 = vmatpush.msra.mxu0 %v655
    %759 = vmatpush.msra.mxu0 %v653
    %760 = vmatpush.msra.mxu0 %v651
    %761 = vmatpush.msra.mxu0 %v649
    %762 = vmatpush.msra.mxu0 %v647
    %763 = vmatpush.msra.mxu0 %v645
    %764 = vmatmul.f32.gmra.mxu0 %v640
    %v765 = vpop.f32.mrf.mxu0
    %v766 = vadd.f32 0.0, %v765
    %767 = vdwg.mxu0
    %768 = vmatpush.msra.mxu0 %v707
    %769 = vmatpush.msra.mxu0 %v705
    %770 = vmatpush.msra.mxu0 %v703
    %771 = vmatpush.msra.mxu0 %v701
    %772 = vmatpush.msra.mxu0 %v699
    %773 = vmatpush.msra.mxu0 %v697
    %774 = vmatpush.msra.mxu0 %v695
    %775 = vmatpush.msra.mxu0 %v693
    %776 = vmatpush.msra.mxu0 %v691
    %777 = vmatpush.msra.mxu0 %v689
    %778 = vmatpush.msra.mxu0 %v687
    %779 = vmatpush.msra.mxu0 %v685
    %780 = vmatpush.msra.mxu0 %v683
    %781 = vmatpush.msra.mxu0 %v681
    %782 = vmatpush.msra.mxu0 %v679
    %783 = vmatpush.msra.mxu0 %v677
    %784 = vmatmul.f32.gmra.mxu0 %v641
    %v785 = vpop.f32.mrf.mxu0
    %v786 = vadd.f32 %v766, %v785
    %787 = vdwg.mxu0
    %v788 = vmul.f32 %v746, 10.0
    %v789 = vmul.f32 %v786, 10.0
    %vm790 = vcmp.gt.f32.partialorder %v788, 20.0
    %vm791 = vcmp.gt.f32.partialorder %v789, 20.0
    %v792 = vsel %vm790, 0.0, %v788
    %v793 = vsel %vm791, 0.0, %v789
    %v794 = vmul.f32 %v792, 1.442695
    %v795 = vpow.pop %v794
    %v796 = vmul.f32 %v793, 1.442695
    %v797 = vpow.pop %v796
    %v798 = vadd.f32 %v795, 1.0
    %v799 = vlog2.pop %v798
    %v800 = vmul.f32 %v799, 0.6931472
    %v801 = vmul.f32 -0.5, %v795
    %v802 = vadd.f32 %v801, 1.0
    %v803 = vmul.f32 %v802, %v795
    %v804 = vand.u32 2147483647, %v795
    %vm805 = vcmp.lt.f32.partialorder %v804, 0.0004427343
    %v806 = vsel %vm805, %v803, %v800
    %v807 = vadd.f32 %v797, 1.0
    %v808 = vlog2.pop %v807
    %v809 = vmul.f32 %v808, 0.6931472
    %v810 = vmul.f32 -0.5, %v797
    %v811 = vadd.f32 %v810, 1.0
    %v812 = vmul.f32 %v811, %v797
    %v813 = vand.u32 2147483647, %v797
    %vm814 = vcmp.lt.f32.partialorder %v813, 0.0004427343
    %v815 = vsel %vm814, %v812, %v809
    %v816 = vmul.f32 %v806, %v637
    %v817 = vmul.f32 %v815, %v637
    %v818 = vsel %vm790, %v746, %v816
    %v819 = vsel %vm791, %v786, %v817
    %820 = vst [vmem:[#allocation13 + $0x10] sm:$0xff] %v818
    %821 = vst [vmem:[#allocation13 + $0x18] sm:$0xff] %v819
    %v822 = vld [vmem:[#allocation8] sm:$0xff]
    %v823 = vld [vmem:[#allocation8 + $0x8] sm:$0xff]
    %v824 = vld [vmem:[#allocation8 + $0x10] sm:$0xff]
    %v825 = vld [vmem:[#allocation8 + $0x18] sm:$0xff]
    %v826 = vld [vmem:[#allocation8 + $0x20] sm:$0xff]
    %v827 = vld [vmem:[#allocation8 + $0x28] sm:$0xff]
    %v828 = vld [vmem:[#allocation8 + $0x30] sm:$0xff]
    %v829 = vld [vmem:[#allocation8 + $0x38] sm:$0xff]
    %v830 = vld [vmem:[#allocation8 + $0x40] sm:$0xff]
    %v831 = vld [vmem:[#allocation8 + $0x48] sm:$0xff]
    %v832 = vld [vmem:[#allocation8 + $0x50] sm:$0xff]
    %v833 = vld [vmem:[#allocation8 + $0x58] sm:$0xff]
    %v834 = vld [vmem:[#allocation8 + $0x60] sm:$0xff]
    %v835 = vld [vmem:[#allocation8 + $0x68] sm:$0xff]
    %v836 = vld [vmem:[#allocation8 + $0x70] sm:$0xff]
    %v837 = vld [vmem:[#allocation8 + $0x78] sm:$0xff]
    %v838 = vld [vmem:[#allocation8 + $0x80] sm:$0xff]
    %v839 = vld [vmem:[#allocation8 + $0x88] sm:$0xff]
    %v840 = vld [vmem:[#allocation8 + $0x90] sm:$0xff]
    %v841 = vld [vmem:[#allocation8 + $0x98] sm:$0xff]
    %v842 = vld [vmem:[#allocation8 + $0xa0] sm:$0xff]
    %v843 = vld [vmem:[#allocation8 + $0xa8] sm:$0xff]
    %v844 = vld [vmem:[#allocation8 + $0xb0] sm:$0xff]
    %v845 = vld [vmem:[#allocation8 + $0xb8] sm:$0xff]
    %v846 = vld [vmem:[#allocation8 + $0xc0] sm:$0xff]
    %v847 = vld [vmem:[#allocation8 + $0xc8] sm:$0xff]
    %v848 = vld [vmem:[#allocation8 + $0xd0] sm:$0xff]
    %v849 = vld [vmem:[#allocation8 + $0xd8] sm:$0xff]
    %v850 = vld [vmem:[#allocation8 + $0xe0] sm:$0xff]
    %v851 = vld [vmem:[#allocation8 + $0xe8] sm:$0xff]
    %v852 = vld [vmem:[#allocation8 + $0xf0] sm:$0xff]
    %v853 = vld [vmem:[#allocation8 + $0xf8] sm:$0xff]
    %854 = vmatpush.msra.mxu0 %v837
    %855 = vmatpush.msra.mxu0 %v836
    %856 = vmatpush.msra.mxu0 %v835
    %857 = vmatpush.msra.mxu0 %v834
    %858 = vmatpush.msra.mxu0 %v833
    %859 = vmatpush.msra.mxu0 %v832
    %860 = vmatpush.msra.mxu0 %v831
    %861 = vmatpush.msra.mxu0 %v830
    %862 = vmatpush.msra.mxu0 %v829
    %863 = vmatpush.msra.mxu0 %v828
    %864 = vmatpush.msra.mxu0 %v827
    %865 = vmatpush.msra.mxu0 %v826
    %866 = vmatpush.msra.mxu0 %v825
    %867 = vmatpush.msra.mxu0 %v824
    %868 = vmatpush.msra.mxu0 %v823
    %869 = vmatpush.msra.mxu0 %v822
    %870 = vmatmul.f32.gmra.mxu0 %v818
    %v871 = vpop.f32.mrf.mxu0
    %v872 = vadd.f32 0.0, %v871
    %873 = vdwg.mxu0
    %874 = vmatpush.msra.mxu0 %v853
    %875 = vmatpush.msra.mxu0 %v852
    %876 = vmatpush.msra.mxu0 %v851
    %877 = vmatpush.msra.mxu0 %v850
    %878 = vmatpush.msra.mxu0 %v849
    %879 = vmatpush.msra.mxu0 %v848
    %880 = vmatpush.msra.mxu0 %v847
    %881 = vmatpush.msra.mxu0 %v846
    %882 = vmatpush.msra.mxu0 %v845
    %883 = vmatpush.msra.mxu0 %v844
    %884 = vmatpush.msra.mxu0 %v843
    %885 = vmatpush.msra.mxu0 %v842
    %886 = vmatpush.msra.mxu0 %v841
    %887 = vmatpush.msra.mxu0 %v840
    %888 = vmatpush.msra.mxu0 %v839
    %889 = vmatpush.msra.mxu0 %v838
    %890 = vmatmul.f32.gmra.mxu0 %v819
    %v891 = vpop.f32.mrf.mxu0
    %v892 = vadd.f32 %v872, %v891
    %893 = vdwg.mxu0
    %v894 = vmul.f32 %v892, 10.0
    %vm895 = vcmp.gt.f32.partialorder %v894, 20.0
    %v896 = vsel %vm895, 0.0, %v894
    %v897 = vmul.f32 %v896, 1.442695
    %v898 = vpow.pop %v897
    %v899 = vadd.f32 %v898, 1.0
    %v900 = vlog2.pop %v899
    %v901 = vmul.f32 %v900, 0.6931472
    %v902 = vmul.f32 -0.5, %v898
    %v903 = vadd.f32 %v902, 1.0
    %v904 = vmul.f32 %v903, %v898
    %v905 = vand.u32 2147483647, %v898
    %vm906 = vcmp.lt.f32.partialorder %v905, 0.0004427343
    %v907 = vsel %vm906, %v904, %v901
    %v908 = vmul.f32 %v907, %v637
    %v909 = vsel %vm895, %v892, %v908
    %910 = vst [vmem:[#allocation13 + $0x20] sm:$0xff] %v909
    %v911 = vld [vmem:[#allocation10] sm:$0xff]
    %v912 = vld [vmem:[#allocation10 + $0x8] sm:$0xff]
    %v913 = vld [vmem:[#allocation10 + $0x10] sm:$0xff]
    %v914 = vld [vmem:[#allocation10 + $0x18] sm:$0xff]
    %v915 = vld [vmem:[#allocation10 + $0x20] sm:$0xff]
    %v916 = vld [vmem:[#allocation10 + $0x28] sm:$0xff]
    %v917 = vld [vmem:[#allocation10 + $0x30] sm:$0xff]
    %v918 = vld [vmem:[#allocation10 + $0x38] sm:$0xff]
    %v919 = vld [vmem:[#allocation10 + $0x40] sm:$0xff]
    %v920 = vld [vmem:[#allocation10 + $0x48] sm:$0xff]
    %v921 = vld [vmem:[#allocation10 + $0x50] sm:$0xff]
    %v922 = vld [vmem:[#allocation10 + $0x58] sm:$0xff]
    %v923 = vld [vmem:[#allocation10 + $0x60] sm:$0xff]
    %v924 = vld [vmem:[#allocation10 + $0x68] sm:$0xff]
    %v925 = vld [vmem:[#allocation10 + $0x70] sm:$0xff]
    %v926 = vld [vmem:[#allocation10 + $0x78] sm:$0xff]
    %927 = vmatpush.msra.mxu0 %v926
    %928 = vmatpush.msra.mxu0 %v925
    %929 = vmatpush.msra.mxu0 %v924
    %930 = vmatpush.msra.mxu0 %v923
    %931 = vmatpush.msra.mxu0 %v922
    %932 = vmatpush.msra.mxu0 %v921
    %933 = vmatpush.msra.mxu0 %v920
    %934 = vmatpush.msra.mxu0 %v919
    %935 = vmatpush.msra.mxu0 %v918
    %936 = vmatpush.msra.mxu0 %v917
    %937 = vmatpush.msra.mxu0 %v916
    %938 = vmatpush.msra.mxu0 %v915
    %939 = vmatpush.msra.mxu0 %v914
    %940 = vmatpush.msra.mxu0 %v913
    %941 = vmatpush.msra.mxu0 %v912
    %942 = vmatpush.msra.mxu0 %v911
    %943 = vmatmul.f32.gmra.mxu0 %v909
    %v944 = vpop.f32.mrf.mxu0
    %v945 = vadd.f32 0.0, %v944
    %946 = vdwg.mxu0
    %v947 = vmul.f32 %v945, 10.0
    %vm948 = vcmp.gt.f32.partialorder %v947, 20.0
    %v949 = vsel %vm948, 0.0, %v947
    %v950 = vmul.f32 %v949, 1.442695
    %v951 = vpow.pop %v950
    %v952 = vadd.f32 %v951, 1.0
    %v953 = vlog2.pop %v952
    %v954 = vmul.f32 %v953, 0.6931472
    %v955 = vmul.f32 -0.5, %v951
    %v956 = vadd.f32 %v955, 1.0
    %v957 = vmul.f32 %v956, %v951
    %v958 = vand.u32 2147483647, %v951
    %vm959 = vcmp.lt.f32.partialorder %v958, 0.0004427343
    %v960 = vsel %vm959, %v957, %v954
    %v961 = vmul.f32 %v960, %v637
    %v962 = vsel %vm948, %v945, %v961
    %963 = vst [vmem:[#allocation13 + $0x28] sm:$0xff] %v962
    %v964 = vld [vmem:[#allocation11] sm:$0xff]
    %v965 = vld [vmem:[#allocation11 + $0x8] sm:$0xff]
    %v966 = vld [vmem:[#allocation11 + $0x10] sm:$0xff]
    %v967 = vld [vmem:[#allocation11 + $0x18] sm:$0xff]
    %v968 = vld [vmem:[#allocation11 + $0x20] sm:$0xff]
    %v969 = vld [vmem:[#allocation11 + $0x28] sm:$0xff]
    %v970 = vld [vmem:[#allocation11 + $0x30] sm:$0xff]
    %v971 = vld [vmem:[#allocation11 + $0x38] sm:$0xff]
    %v972 = vld [vmem:[#allocation11 + $0x40] sm:$0xff]
    %v973 = vld [vmem:[#allocation11 + $0x48] sm:$0xff]
    %v974 = vld [vmem:[#allocation11 + $0x50] sm:$0xff]
    %v975 = vld [vmem:[#allocation11 + $0x58] sm:$0xff]
    %v976 = vld [vmem:[#allocation11 + $0x60] sm:$0xff]
    %v977 = vld [vmem:[#allocation11 + $0x68] sm:$0xff]
    %v978 = vld [vmem:[#allocation11 + $0x70] sm:$0xff]
    %v979 = vld [vmem:[#allocation11 + $0x78] sm:$0xff]
    %980 = vmatpush.msra.mxu0 %v979
    %981 = vmatpush.msra.mxu0 %v978
    %982 = vmatpush.msra.mxu0 %v977
    %983 = vmatpush.msra.mxu0 %v976
    %984 = vmatpush.msra.mxu0 %v975
    %985 = vmatpush.msra.mxu0 %v974
    %986 = vmatpush.msra.mxu0 %v973
    %987 = vmatpush.msra.mxu0 %v972
    %988 = vmatpush.msra.mxu0 %v971
    %989 = vmatpush.msra.mxu0 %v970
    %990 = vmatpush.msra.mxu0 %v969
    %991 = vmatpush.msra.mxu0 %v968
    %992 = vmatpush.msra.mxu0 %v967
    %993 = vmatpush.msra.mxu0 %v966
    %994 = vmatpush.msra.mxu0 %v965
    %995 = vmatpush.msra.mxu0 %v964
    %996 = vmatmul.f32.gmra.mxu0 %v962
    %v997 = vpop.f32.mrf.mxu0
    %v998 = vadd.f32 0.0, %v997
    %999 = vdwg.mxu0
    %1000 = vst [vmem:[#allocation13 + $0x30] sm:$0xff] %v998
    // Predicated region
    $region50: #{tpu_custom_call.1} parent=1 // pred_check
      _
    $region51: #{tpu_custom_call.1} parent=1 // pred_check_branch
      %1002 = sbr.rel (0) target = $region53
    $region52: #{tpu_custom_call.1} parent=1 // pred_region
      %1004 = vsyncadd [#allocation4], 0
      %s1006 = sshll.u32 [#allocation13], 4
      %s1007 = int_to_ptr.vmem [resolvable:$true] %s1006
      %s1008 = sshll.u32 %s6, 4
      %s1009 = int_to_ptr.hbm [resolvable:$true] %s1008
      %1011 = dma.vmem_to_hbm [thread:$0]  %s1007, 896, %s1009, [#allocation4]
    $region53: #{tpu_custom_call.1} parent=1 // pred_fallthru
      _
    // Predicated region
    $region54: #{tpu_custom_call.1} parent=1 // pred_check
      _
    $region55: #{tpu_custom_call.1} parent=1 // pred_check_branch
      %1013 = sbr.rel (0) target = $region57
    $region56: #{tpu_custom_call.1} parent=1 // pred_region
      %1015 = dma.done [#allocation4], 896
    $region57: #{tpu_custom_call.1} parent=1 // pred_fallthru
      _
    %1016 = vsyncpa [#allocation3], 1
    %1017 = vsyncpa [#allocation6], 1
    %1018 = vsyncpa [#allocation9], 1
    %1019 = vsyncpa [#allocation12], 1
    %1020 = vsyncpa [#allocation4], 1

</llo_original>
